<compile_context>
chip_gen: v7x
topology: tpu7x:2x2x1
jax: 0.10.0
libtpu: 0.0.40
codegen_flags: <defaults>
</compile_context>

<pallas_src>
from math import gcd

import jax
import jax.numpy as jnp
from jax.experimental import pallas as pl
from jax.experimental.pallas import tpu as pltpu

LANE = 128
CAP_LANES = 1024  # max packed row width (lanes); 512-1024 is the sweet spot


def _layer_scale_kernel(x_ref, gamma_ref, o_ref):
    # x_ref: (tile_n, tile_c), gamma_ref: (1, tile_c).  VPU broadcast multiply.
    o_ref[...] = x_ref[...] * gamma_ref[...]


def _choose_pack(dim: int, n: int) -> int:
    """Rows folded into the lane axis so k*dim is a multiple of 128, <= CAP."""
    if dim % LANE == 0:
        return 1  # already lane dense
    k_unit = LANE // gcd(dim, LANE)  # minimal fold: k_unit*dim % 128 == 0
    if k_unit * dim > CAP_LANES:
        return 1  # lcm(dim,128) too wide -> fall back to unpacked
    k_max = (CAP_LANES // (dim * k_unit)) * k_unit
    # Prefer the widest k that divides n exactly (free reshape, no remainder).
    for k in range(k_max, 0, -k_unit):
        if k <= n and n % k == 0:
            return k
    # Otherwise take the widest that fits; remainder rows handled outside.
    for k in range(k_max, 0, -k_unit):
        if k <= n:
            return k
    return 1  # fewer rows than the minimal fold


def _layer_scale_2d(xp: jax.Array, gp: jax.Array) -> jax.Array:
    """y = xp * gp for xp:(R, C), gp:(1, C)."""
    n_rows, dim_packed = xp.shape
    itemsize = jnp.dtype(xp.dtype).itemsize
    sublane = max(8, 32 // itemsize)  # 8 f32, 16 bf16, 32 int8

    # Generation-aware VMEM budget: ~48 MiB limit / 8 MiB per buffer on v7x
    # (64 MiB physical), ~96 MiB / 16 MiB on v5e/v6e (128 MiB physical).
    try:
        vmem_cap = int(pltpu.get_tpu_info().vmem_capacity_bytes)
    except Exception:
        vmem_cap = 64 * 1024 * 1024  # conservative (v7x-sized) fallback
    vmem_limit = min((vmem_cap * 3) // 4, 96 * 1024 * 1024)
    per_buffer = vmem_limit // 6  # 2 double-buffered streams (in+out) + slack

    # Lane-axis tiling only if even a minimum-row tile would bust the budget
    # (very large hidden dims).
    tile_c = dim_packed
    if dim_packed % LANE == 0 and dim_packed * sublane * itemsize > per_buffer:
        max_c = max(LANE, (per_buffer // (sublane * itemsize) // LANE) * LANE)
        tile_c = LANE
        c = 2 * LANE
        while c <= min(max_c, dim_packed):
            if dim_packed % c == 0:
                tile_c = c
            c += LANE

    # Row tile sized purely by bytes (no artificial row cap).
    tile_n = per_buffer // (tile_c * itemsize)
    tile_n = max(sublane, (tile_n // sublane) * sublane)
    if n_rows <= tile_n:
        tile_n = n_rows  # full-extent block is exempt from the sublane rule

    grid = (pl.cdiv(n_rows, tile_n), pl.cdiv(dim_packed, tile_c))

    cost = pl.CostEstimate(
        flops=n_rows * dim_packed,
        transcendentals=0,
        bytes_accessed=2 * xp.size * itemsize + gp.size * itemsize,
    )

    # NOTE: gamma's constant index_map means the pipeliner keeps its block
    # resident instead of re-DMA'ing per step (verified pattern).  If a Mosaic
    # dump ever shows exposed DMA at step boundaries, sweep
    # pipeline_mode=pl.Buffered(3) on the x/out specs.
    return pl.pallas_call(
        _layer_scale_kernel,
        out_shape=jax.ShapeDtypeStruct((n_rows, dim_packed), xp.dtype),
        grid_spec=pl.GridSpec(
            grid=grid,
            in_specs=[
                pl.BlockSpec((tile_n, tile_c), lambda i, j: (i, j)),
                pl.BlockSpec((1, tile_c), lambda i, j: (0, j)),
            ],
            out_specs=pl.BlockSpec((tile_n, tile_c), lambda i, j: (i, j)),
        ),
        compiler_params=pltpu.CompilerParams(
            dimension_semantics=("parallel", "parallel"),
            vmem_limit_bytes=vmem_limit,
        ),
        cost_estimate=cost,
    )(xp, gp)


def layer_scale(x: jax.Array, gamma: jax.Array) -> jax.Array:
    """Applies y = x * gamma with gamma broadcast over the last axis of x."""
    orig_shape = x.shape
    dim = orig_shape[-1]
    assert gamma.shape == (dim,)
    gamma = gamma.astype(x.dtype)

    x2d = x.reshape(-1, dim)  # (N, dim)
    n = x2d.shape[0]
    if n == 0:
        return x

    k = _choose_pack(dim, n)
    bulk = (n // k) * k
    rem = n - bulk
    dim_packed = dim * k

    xb = (x2d[:bulk] if rem else x2d).reshape(bulk // k, dim_packed)
    gp = (jnp.tile(gamma, k) if k > 1 else gamma).reshape(1, dim_packed)

    out_b = _layer_scale_2d(xb, gp).reshape(bulk, dim)

    if rem:
        # At most k-1 leftover rows: tiny plain-JAX path instead of padding /
        # slicing the whole tensor (which would double HBM traffic).
        # TODO(synk): the concatenate below still copies; the real fix is
        # fusing the scale into the adjacent kernel's epilogue.
        out = jnp.concatenate([out_b, x2d[bulk:] * gamma], axis=0)
    else:
        out = out_b
    return out.reshape(orig_shape)


if __name__ == "__main__":
    key = jax.random.PRNGKey(0)
    batch, seq, dim = 2, 8, 32

    x = jax.random.normal(key, (batch, seq, dim), dtype=jnp.float32)

    # Deterministic parameter init, matching nn.Parameter(init_value * ones(dim))
    init_value = 0.01
    gamma = init_value * jnp.ones((dim,), dtype=jnp.float32)

    y = layer_scale(x, gamma)
    jax.block_until_ready(y)

    # Reference check against plain-JAX broadcast multiply
    ref = x * gamma
    assert y.shape == ref.shape
    assert jnp.allclose(y, ref, atol=1e-6, rtol=1e-6)

    print("KERNEL_OK")
</pallas_src>

<mosaic_0001>
module attributes {stable_mosaic.version = 11 : i64} {
  func.func @_layer_scale_kernel(%arg0: i32, %arg1: i32, %arg2: memref<1x512xf32, #tpu.memory_space<vmem>>, %arg3: memref<1x512xf32, #tpu.memory_space<vmem>>, %arg4: memref<1x512xf32, #tpu.memory_space<vmem>>) attributes {dimension_semantics = [#tpu.dimension_semantics<parallel>, #tpu.dimension_semantics<parallel>], iteration_bounds = array<i64: 1, 1>, scalar_prefetch = 0 : i64, scratch_operands = 0 : i64, tpu.core_type = #tpu.core_type<tc>, window_params = [{transform_indices = @transform_0, window_bounds = array<i64: 1, 512>}, {transform_indices = @transform_1, window_bounds = array<i64: 1, 512>}, {transform_indices = @transform_2, window_bounds = array<i64: 1, 512>}]} {
    %c0 = arith.constant 0 : index
    %c0_0 = arith.constant 0 : index
    %0 = vector.load %arg2[%c0, %c0_0] : memref<1x512xf32, #tpu.memory_space<vmem>>, vector<1x512xf32>
    %c0_1 = arith.constant 0 : index
    %c0_2 = arith.constant 0 : index
    %1 = vector.load %arg3[%c0_1, %c0_2] : memref<1x512xf32, #tpu.memory_space<vmem>>, vector<1x512xf32>
    %2 = arith.mulf %0, %1 : vector<1x512xf32>
    %c0_3 = arith.constant 0 : index
    %c0_4 = arith.constant 0 : index
    %3 = vector.load %arg4[%c0_3, %c0_4] : memref<1x512xf32, #tpu.memory_space<vmem>>, vector<1x512xf32>
    tpu.vector_store %arg4[%c0_3, %c0_4], %2 {strides = array<i32>} : memref<1x512xf32, #tpu.memory_space<vmem>>, vector<1x512xf32>,
    return
  }
  func.func @transform_0(%arg0: i32, %arg1: i32) -> (i32, i32) {
    %c0_i32 = arith.constant 0 : i32
    return %arg0, %arg1 : i32, i32
  }
  func.func @transform_1(%arg0: i32, %arg1: i32) -> (i32, i32) {
    %c0_i32 = arith.constant 0 : i32
    %c0_i32_0 = arith.constant 0 : i32
    return %c0_i32, %arg1 : i32, i32
  }
  func.func @transform_2(%arg0: i32, %arg1: i32) -> (i32, i32) {
    %c0_i32 = arith.constant 0 : i32
    return %arg0, %arg1 : i32, i32
  }
}

</mosaic_0001>

<llo_original>
// kernel: tpu_custom_call.1
$region0: #{tpu_custom_call.1}
  #allocation0 [shape = 'u32[]', space=smem, size = 0x4, offset = 0x4, fixed_abs, tag = 'smem constant byte address 0x4 - core index']
  #allocation1 [shape = 'u32[144,128]{1,0:T(1,128)}', space=vmem, size = 0x12000, scoped, tag = 'internal scratch']
  %s0 = inlined_call_operand.hbm [shape: f32[1,512], index: 0, kind: input, shape index: {}]
  %s1 = inlined_call_operand.hbm [shape: f32[1,512], index: 1, kind: input, shape index: {}]
  %s2 = inlined_call_operand.hbm [shape: f32[1,512], index: 2, kind: output, shape index: {}]
  %s3 = sld [smem:[#allocation0]]
  $region26: #{tpu_custom_call.1} parent=0
    _
  %s5 = ssub.s32 1, %s3
  %s6 = scalar_select 0, %s5, %s3
  $region1: #{tpu_custom_call.1} parent=0
    #allocation2 [shape = 'u8[2048]{0}', space=vmem, size = 0x800, scoped, tag = 'input window, operand 0, single buffered']
    #allocation3 [shape = 's32[1]{0}', space=sflag, size = 0x4, scoped, tag = 'scoped memory for tpu_custom_call.1']
    #allocation4 [shape = 's32[1]{0}', space=sflag, size = 0x4, scoped, tag = 'scoped memory for tpu_custom_call.1']
    #allocation5 [shape = 'u8[2048]{0}', space=vmem, size = 0x800, scoped, tag = 'input window, operand 1, single buffered']
    #allocation6 [shape = 's32[1]{0}', space=sflag, size = 0x4, scoped, tag = 'scoped memory for tpu_custom_call.1']
    #allocation7 [shape = 'u8[2048]{0}', space=vmem, size = 0x800, scoped, tag = 'output window, operand 0, single buffered']
    %7 = vsyncpa [#allocation3], 0
    %8 = vsyncpa [#allocation6], 0
    %9 = vsyncpa [#allocation4], 0
    // Predicated region
    $region2: #{tpu_custom_call.1} parent=1 // pred_check
      _
    $region3: #{tpu_custom_call.1} parent=1 // pred_check_branch
      %11 = sbr.rel (0) target = $region5
    $region4: #{tpu_custom_call.1} parent=1 // pred_region
      %s13 = ssub.s32 64, 64
      %14 = vsyncadd [#allocation3], %s13
      %s16 = sshll.u32 [#allocation2], 4
      %s17 = int_to_ptr.vmem [resolvable:$true] %s16
      %19 = dma.hbm_to_vmem [thread:$0]  %s0, 64, %s17, [#allocation3]
    $region5: #{tpu_custom_call.1} parent=1 // pred_fallthru
      _
    // Predicated region
    $region6: #{tpu_custom_call.1} parent=1 // pred_check
      _
    $region7: #{tpu_custom_call.1} parent=1 // pred_check_branch
      %21 = sbr.rel (0) target = $region9
    $region8: #{tpu_custom_call.1} parent=1 // pred_region
      %s23 = ssub.s32 64, 64
      %24 = vsyncadd [#allocation6], %s23
      %s26 = sshll.u32 [#allocation5], 4
      %s27 = int_to_ptr.vmem [resolvable:$true] %s26
      %29 = dma.hbm_to_vmem [thread:$0]  %s1, 64, %s27, [#allocation6]
    $region9: #{tpu_custom_call.1} parent=1 // pred_fallthru
      _
    // Predicated region
    $region10: #{tpu_custom_call.1} parent=1 // pred_check
      _
    $region11: #{tpu_custom_call.1} parent=1 // pred_check_branch
      %31 = sbr.rel (0) target = $region13
    $region12: #{tpu_custom_call.1} parent=1 // pred_region
      %32 = dma.done [#allocation3], 64
    $region13: #{tpu_custom_call.1} parent=1 // pred_fallthru
      _
    // Predicated region
    $region14: #{tpu_custom_call.1} parent=1 // pred_check
      _
    $region15: #{tpu_custom_call.1} parent=1 // pred_check_branch
      %34 = sbr.rel (0) target = $region17
    $region16: #{tpu_custom_call.1} parent=1 // pred_region
      %35 = dma.done [#allocation6], 64
    $region17: #{tpu_custom_call.1} parent=1 // pred_fallthru
      _
    %v36 = vld [vmem:[#allocation2] sm:$0xf]
    %v37 = vld [vmem:[#allocation5] sm:$0xf]
    %v38 = vmul.f32 %v36, %v37
    %v39 = vlaneseq
    %vm40 = vcmp.ge.s32.totalorder %v39, 0
    %vm41 = vcmp.lt.s32.totalorder %v39, 512
    %vm42 = vmand %vm40, %vm41
    %43 = vst.msk [vmem:[#allocation7] sm:$0xf] %vm42, %v38
    // Predicated region
    $region18: #{tpu_custom_call.1} parent=1 // pred_check
      _
    $region19: #{tpu_custom_call.1} parent=1 // pred_check_branch
      %45 = sbr.rel (0) target = $region21
    $region20: #{tpu_custom_call.1} parent=1 // pred_region
      %s47 = ssub.s32 64, 64
      %48 = vsyncadd [#allocation4], %s47
      %s50 = sshll.u32 [#allocation7], 4
      %s51 = int_to_ptr.vmem [resolvable:$true] %s50
      %53 = dma.vmem_to_hbm [thread:$0]  %s51, 64, %s2, [#allocation4]
    $region21: #{tpu_custom_call.1} parent=1 // pred_fallthru
      _
    // Predicated region
    $region22: #{tpu_custom_call.1} parent=1 // pred_check
      _
    $region23: #{tpu_custom_call.1} parent=1 // pred_check_branch
      %55 = sbr.rel (0) target = $region25
    $region24: #{tpu_custom_call.1} parent=1 // pred_region
      %56 = dma.done [#allocation4], 64
    $region25: #{tpu_custom_call.1} parent=1 // pred_fallthru
      _
    %57 = vsyncpa [#allocation3], 1
    %58 = vsyncpa [#allocation6], 1
    %59 = vsyncpa [#allocation4], 1

</llo_original>
